<compile_context>
chip_gen: v7x
topology: tpu7x:2x2x1
jax: 0.10.0
libtpu: 0.0.40
codegen_flags: <defaults>
</compile_context>

<pallas_src>
import jax
import jax.numpy as jnp
from jax.experimental import pallas as pl
from jax.experimental.pallas import tpu as pltpu


def _round_up(x, m):
    return ((x + m - 1) // m) * m


def _pick_tiles(batch, out_channels, in_channels):
    """Pick (TB, TC) tiles that keep the double-buffered working set small."""
    tb = min(_round_up(batch, 8), 1024)          # sublane-aligned batch tile
    tc = min(_round_up(out_channels, 128), 512)  # lane-aligned channel tile

    # Double-buffered VMEM cost (bytes): x + mean_t + out + m_sq, all f32.
    budget = 20 * 1024 * 1024  # conservative for v7x's 32 MiB scoped default

    def cost(tb_, tc_):
        return 2 * 4 * (tb_ * in_channels + in_channels * tc_ + tb_ * tc_ + tc_)

    while cost(tb, tc) > budget:
        if tb > 8:
            tb = max(8, tb // 2)
        elif tc > 128:
            tc = max(128, tc // 2)
        else:
            break
    # TODO(synk): for very large in_channels the D axis would also need tiling
    # (with an accumulator over a reduction grid axis); not needed here.
    return tb, tc


def prepare_quadra_params(mean, c_pad):
    """Precompute the kernel-side constants.

    If `mean` is a static/reused parameter, hoist this call out of the hot
    path (it is cheap, but it is pure per-call overhead otherwise).
    """
    mean = mean.astype(jnp.float32)
    out_channels, in_channels = mean.shape
    # Fold the -2 into the matmul constant so the kernel does no extra scale.
    neg2_mean_t = (-2.0 * mean.T)                                    # (D, C)
    m_sq = jnp.sum(mean * mean, axis=-1, dtype=jnp.float32)[None, :]  # (1, C)
    pad_c = c_pad - out_channels
    if pad_c:
        neg2_mean_t = jnp.pad(neg2_mean_t, ((0, 0), (0, pad_c)))
        m_sq = jnp.pad(m_sq, ((0, 0), (0, pad_c)))
    return neg2_mean_t, m_sq


def _quadra_kernel(x_ref, nm_ref, msq_ref, o_ref):
    # x_ref   : (TB, D)  f32
    # nm_ref  : (D, TC)  f32   == -2 * mean^T (zero-padded columns)
    # msq_ref : (1, TC)  f32   == ||mean||^2  (zero-padded columns)
    # o_ref   : (TB, TC) f32
    x = x_ref[...]
    x_sq = jnp.sum(x * x, axis=-1, keepdims=True)                       # (TB, 1)
    cross = jnp.dot(x, nm_ref[...], preferred_element_type=jnp.float32)  # MXU
    dist2 = x_sq + cross + msq_ref[...]                                  # (TB, TC)
    # Guard against cancellation-induced negatives / zeros.
    dist2 = jnp.maximum(dist2, jnp.float32(1e-30))
    o_ref[...] = jax.lax.rsqrt(dist2)


def quadra_layer_forward(x, mean):
    """QuadraLayer.forward.

    x    : (batch, in_channels)        float32
    mean : (out_channels, in_channels) float32  (PyTorch layout)
    returns (batch, out_channels) float32
    """
    batch, in_channels = x.shape
    out_channels = mean.shape[0]

    tb, tc = _pick_tiles(batch, out_channels, in_channels)
    b_pad = _round_up(batch, tb)
    c_pad = _round_up(out_channels, tc)

    x = x.astype(jnp.float32)
    if b_pad != batch:
        x = jnp.pad(x, ((0, b_pad - batch), (0, 0)))

    neg2_mean_t, m_sq = prepare_quadra_params(mean, c_pad)

    grid = (b_pad // tb, c_pad // tc)

    out_padded = pl.pallas_call(
        _quadra_kernel,
        out_shape=jax.ShapeDtypeStruct((b_pad, c_pad), jnp.float32),
        grid_spec=pltpu.PrefetchScalarGridSpec(
            num_scalar_prefetch=0,
            grid=grid,
            in_specs=[
                pl.BlockSpec((tb, in_channels), lambda i, j: (i, 0)),
                pl.BlockSpec((in_channels, tc), lambda i, j: (0, j)),
                pl.BlockSpec((1, tc), lambda i, j: (0, j)),
            ],
            out_specs=pl.BlockSpec((tb, tc), lambda i, j: (i, j)),
        ),
        compiler_params=pltpu.CompilerParams(
            dimension_semantics=("parallel", "parallel"),
        ),
    )(x, neg2_mean_t, m_sq)

    return out_padded[:batch, :out_channels]


def _reference_forward(x, mean):
    """Pure-JAX reference matching the PyTorch loop semantics."""
    diffs = x[:, None, :] - mean[None, :, :]          # (B, C, D)
    dist2 = jnp.sum(diffs * diffs, axis=-1)           # (B, C)
    return 1.0 / jnp.sqrt(dist2)


if __name__ == "__main__":
    batch = 8
    in_channels = 32
    out_channels = 4

    key = jax.random.PRNGKey(0)
    kx, km = jax.random.split(key)
    x = jax.random.normal(kx, (batch, in_channels), jnp.float32)
    mean = jax.random.normal(km, (out_channels, in_channels), jnp.float32)

    out = jax.block_until_ready(quadra_layer_forward(x, mean))
    ref = _reference_forward(x, mean)

    assert out.shape == (batch, out_channels), out.shape
    assert jnp.allclose(out, ref, rtol=1e-3, atol=1e-5), (out, ref)

    print("KERNEL_OK")
</pallas_src>

<mosaic_0001>
module attributes {stable_mosaic.version = 11 : i64} {
  func.func @_quadra_kernel(%arg0: i32, %arg1: i32, %arg2: memref<8x32xf32, #tpu.memory_space<vmem>>, %arg3: memref<32x128xf32, #tpu.memory_space<vmem>>, %arg4: memref<1x128xf32, #tpu.memory_space<vmem>>, %arg5: memref<8x128xf32, #tpu.memory_space<vmem>>) attributes {dimension_semantics = [#tpu.dimension_semantics<parallel>, #tpu.dimension_semantics<parallel>], iteration_bounds = array<i64: 1, 1>, scalar_prefetch = 0 : i64, scratch_operands = 0 : i64, tpu.core_type = #tpu.core_type<tc>, window_params = [{transform_indices = @transform_0, window_bounds = array<i64: 8, 32>}, {transform_indices = @transform_1, window_bounds = array<i64: 32, 128>}, {transform_indices = @transform_2, window_bounds = array<i64: 1, 128>}, {transform_indices = @transform_3, window_bounds = array<i64: 8, 128>}]} {
    %c0 = arith.constant 0 : index
    %c0_0 = arith.constant 0 : index
    %0 = vector.load %arg2[%c0, %c0_0] : memref<8x32xf32, #tpu.memory_space<vmem>>, vector<8x32xf32>
    %1 = arith.mulf %0, %0 : vector<8x32xf32>
    %cst = arith.constant dense<0.000000e+00> : vector<8xf32>
    %2 = vector.multi_reduction <add>, %1, %cst [1] : vector<8x32xf32> to vector<8xf32>
    %3 = vector.shape_cast %2 : vector<8xf32> to vector<8x1xf32>
    %c0_1 = arith.constant 0 : index
    %c0_2 = arith.constant 0 : index
    %4 = vector.load %arg3[%c0_1, %c0_2] : memref<32x128xf32, #tpu.memory_space<vmem>>, vector<32x128xf32>
    %cst_3 = arith.constant dense<0.000000e+00> : vector<8x128xf32>
    %5 = tpu.matmul %0, %4, %cst_3 {dimension_numbers = #tpu.dot_dimension_numbers<[1], [0], [0], [1], [0, 0, 1, 1], [], []>} : vector<8x32xf32>, vector<32x128xf32>, vector<8x128xf32> -> vector<8x128xf32>
    %6 = vector.broadcast %3 : vector<8x1xf32> to vector<8x128xf32>
    %7 = arith.addf %6, %5 : vector<8x128xf32>
    %c0_4 = arith.constant 0 : index
    %c0_5 = arith.constant 0 : index
    %8 = vector.load %arg4[%c0_4, %c0_5] : memref<1x128xf32, #tpu.memory_space<vmem>>, vector<1x128xf32>
    %9 = vector.broadcast %8 : vector<1x128xf32> to vector<8x128xf32>
    %10 = arith.addf %7, %9 : vector<8x128xf32>
    %cst_6 = arith.constant 1.000000e-30 : f32
    %11 = vector.broadcast %cst_6 : f32 to vector<8x128xf32>
    %12 = arith.maximumf %10, %11 : vector<8x128xf32>
    %13 = math.rsqrt %12 : vector<8x128xf32>
    %c0_7 = arith.constant 0 : index
    %c0_8 = arith.constant 0 : index
    %14 = vector.load %arg5[%c0_7, %c0_8] : memref<8x128xf32, #tpu.memory_space<vmem>>, vector<8x128xf32>
    tpu.vector_store %arg5[%c0_7, %c0_8], %13 {strides = array<i32>} : memref<8x128xf32, #tpu.memory_space<vmem>>, vector<8x128xf32>,
    return
  }
  func.func @transform_0(%arg0: i32, %arg1: i32) -> (i32, i32) {
    %c0_i32 = arith.constant 0 : i32
    %c0_i32_0 = arith.constant 0 : i32
    return %arg0, %c0_i32 : i32, i32
  }
  func.func @transform_1(%arg0: i32, %arg1: i32) -> (i32, i32) {
    %c0_i32 = arith.constant 0 : i32
    %c0_i32_0 = arith.constant 0 : i32
    return %c0_i32, %arg1 : i32, i32
  }
  func.func @transform_2(%arg0: i32, %arg1: i32) -> (i32, i32) {
    %c0_i32 = arith.constant 0 : i32
    %c0_i32_0 = arith.constant 0 : i32
    return %c0_i32, %arg1 : i32, i32
  }
  func.func @transform_3(%arg0: i32, %arg1: i32) -> (i32, i32) {
    %c0_i32 = arith.constant 0 : i32
    return %arg0, %arg1 : i32, i32
  }
}

</mosaic_0001>

<llo_original>
// kernel: tpu_custom_call.1
$region0: #{tpu_custom_call.1}
  #allocation0 [shape = 'u32[]', space=smem, size = 0x4, offset = 0x4, fixed_abs, tag = 'smem constant byte address 0x4 - core index']
  #allocation1 [shape = 'u32[144,128]{1,0:T(1,128)}', space=vmem, size = 0x12000, scoped, tag = 'internal scratch']
  %s0 = inlined_call_operand.hbm [shape: f32[8,32], index: 0, kind: input, shape index: {}]
  %s1 = inlined_call_operand.hbm [shape: f32[32,128], index: 1, kind: input, shape index: {}]
  %s2 = inlined_call_operand.vmem [shape: f32[1,128], index: 2, kind: input, shape index: {}]
  %s3 = inlined_call_operand.hbm [shape: f32[8,128], index: 3, kind: output, shape index: {}]
  %s4 = sld [smem:[#allocation0]]
  $region30: #{tpu_custom_call.1} parent=0
    _
  %s6 = ssub.s32 1, %s4
  %s7 = scalar_select 0, %s6, %s4
  $region1: #{tpu_custom_call.1} parent=0
    #allocation2 [shape = 'u8[4096]{0}', space=vmem, size = 0x1000, scoped, tag = 'input window, operand 0, single buffered']
    #allocation3 [shape = 's32[1]{0}', space=sflag, size = 0x4, scoped, tag = 'scoped memory for tpu_custom_call.1']
    #allocation4 [shape = 's32[1]{0}', space=sflag, size = 0x4, scoped, tag = 'scoped memory for tpu_custom_call.1']
    #allocation5 [shape = 'u8[16384]{0}', space=vmem, size = 0x4000, scoped, tag = 'input window, operand 1, single buffered']
    #allocation6 [shape = 's32[1]{0}', space=sflag, size = 0x4, scoped, tag = 'scoped memory for tpu_custom_call.1']
    #allocation7 [shape = 'u8[4096]{0}', space=vmem, size = 0x1000, scoped, tag = 'output window, operand 0, single buffered']
    %8 = vsyncpa [#allocation3], 0
    %9 = vsyncpa [#allocation6], 0
    %10 = vsyncpa [#allocation4], 0
    // Predicated region
    $region2: #{tpu_custom_call.1} parent=1 // pred_check
      _
    $region3: #{tpu_custom_call.1} parent=1 // pred_check_branch
      %12 = sbr.rel (0) target = $region5
    $region4: #{tpu_custom_call.1} parent=1 // pred_region
      %s14 = ssub.s32 128, 128
      %15 = vsyncadd [#allocation3], %s14
      %s17 = sshll.u32 [#allocation2], 4
      %s18 = int_to_ptr.vmem [resolvable:$true] %s17
      %20 = dma.hbm_to_vmem [thread:$0]  %s0, 128, %s18, [#allocation3]
    $region5: #{tpu_custom_call.1} parent=1 // pred_fallthru
      _
    // Predicated region
    $region6: #{tpu_custom_call.1} parent=1 // pred_check
      _
    $region7: #{tpu_custom_call.1} parent=1 // pred_check_branch
      %22 = sbr.rel (0) target = $region9
    $region8: #{tpu_custom_call.1} parent=1 // pred_region
      %s24 = ssub.s32 512, 512
      %25 = vsyncadd [#allocation6], %s24
      %s26 = sshll.u32 [#allocation5], 4
      %s27 = int_to_ptr.vmem [resolvable:$true] %s26
      %32 = dma.hbm_to_vmem [thread:$0]  %s1, 512, %s27, [#allocation6], 128, 128, 8
    $region9: #{tpu_custom_call.1} parent=1 // pred_fallthru
      _
    // Predicated region
    $region10: #{tpu_custom_call.1} parent=1 // pred_check
      _
    $region11: #{tpu_custom_call.1} parent=1 // pred_check_branch
      %34 = sbr.rel (0) target = $region13
    $region12: #{tpu_custom_call.1} parent=1 // pred_region
      _
    $region13: #{tpu_custom_call.1} parent=1 // pred_fallthru
      _
    // Predicated region
    $region14: #{tpu_custom_call.1} parent=1 // pred_check
      _
    $region15: #{tpu_custom_call.1} parent=1 // pred_check_branch
      %36 = sbr.rel (0) target = $region17
    $region16: #{tpu_custom_call.1} parent=1 // pred_region
      %37 = dma.done [#allocation3], 128
    $region17: #{tpu_custom_call.1} parent=1 // pred_fallthru
      _
    // Predicated region
    $region18: #{tpu_custom_call.1} parent=1 // pred_check
      _
    $region19: #{tpu_custom_call.1} parent=1 // pred_check_branch
      %39 = sbr.rel (0) target = $region21
    $region20: #{tpu_custom_call.1} parent=1 // pred_region
      %40 = dma.done [#allocation6], 512
    $region21: #{tpu_custom_call.1} parent=1 // pred_fallthru
      _
    %v41 = vld [vmem:[#allocation2] sm:$0xff]
    %v42 = vmul.f32 %v41, %v41
    %vm43 = vcmask 261120
    %v44 = vsel %vm43, %v42, 0.0
    %45 = vadd.xlane.f32.xlu0 %v44
    %v46 = vpop.xlane.xlu0 %45
    %v47 = vld [vmem:[#allocation5] sm:$0xff]
    %v48 = vld [vmem:[#allocation5 + $0x8] sm:$0xff]
    %v49 = vld [vmem:[#allocation5 + $0x10] sm:$0xff]
    %v50 = vld [vmem:[#allocation5 + $0x18] sm:$0xff]
    %v52 = vsel %vm43, %v41, 0
    %54 = vmatprep.subr.mxu0 0.0
    %55 = vmatpush1.msra.mxu0 %v47
    %56 = vmatprep.subr.mxu0 0.0
    %57 = vmatpush1.msra.mxu0 %v48
    %58 = vmatprep.subr.mxu0 0.0
    %59 = vmatpush1.msra.mxu0 %v49
    %60 = vmatprep.subr.mxu0 0.0
    %61 = vmatpush1.msra.mxu0 %v50
    %62 = vmatprep.subr.mxu0 0.0
    %63 = vmatpush1.msra.mxu0 0.0
    %64 = vmatprep.subr.mxu0 0.0
    %65 = vmatpush1.msra.mxu0 0.0
    %66 = vmatprep.subr.mxu0 0.0
    %67 = vmatpush1.msra.mxu0 0.0
    %68 = vmatprep.subr.mxu0 0.0
    %69 = vmatpush1.msra.mxu0 0.0
    %70 = vmatprep.subr.mxu0 0.0
    %71 = vmatpush1.msra.mxu0 0.0
    %72 = vmatprep.subr.mxu0 0.0
    %73 = vmatpush1.msra.mxu0 0.0
    %74 = vmatprep.subr.mxu0 0.0
    %75 = vmatpush1.msra.mxu0 0.0
    %76 = vmatprep.subr.mxu0 0.0
    %77 = vmatpush1.msra.mxu0 0.0
    %78 = vmatprep.subr.mxu0 0.0
    %79 = vmatpush1.msra.mxu0 0.0
    %80 = vmatprep.subr.mxu0 0.0
    %81 = vmatpush1.msra.mxu0 0.0
    %82 = vmatprep.subr.mxu0 0.0
    %83 = vmatpush1.msra.mxu0 0.0
    %84 = vmatprep.subr.mxu0 0.0
    %85 = vmatpush1.msra.mxu0 0.0
    %86 = vmatprep.subr.mxu0 0.0
    %87 = vmatpush1.msra.mxu0 0.0
    %88 = vmatprep.subr.mxu0 0.0
    %89 = vmatpush1.msra.mxu0 0.0
    %90 = vmatprep.subr.mxu0 0.0
    %91 = vmatpush1.msra.mxu0 0.0
    %92 = vmatprep.subr.mxu0 0.0
    %93 = vmatpush1.msra.mxu0 0.0
    %94 = vmatprep.subr.mxu0 0.0
    %95 = vmatpush1.msra.mxu0 0.0
    %96 = vmatprep.subr.mxu0 0.0
    %97 = vmatpush1.msra.mxu0 0.0
    %98 = vmatprep.subr.mxu0 0.0
    %99 = vmatpush1.msra.mxu0 0.0
    %100 = vmatprep.subr.mxu0 0.0
    %101 = vmatpush1.msra.mxu0 0.0
    %102 = vmatprep.subr.mxu0 0.0
    %103 = vmatpush1.msra.mxu0 0.0
    %104 = vmatprep.subr.mxu0 0.0
    %105 = vmatpush1.msra.mxu0 0.0
    %106 = vmatprep.subr.mxu0 0.0
    %107 = vmatpush1.msra.mxu0 0.0
    %108 = vmatprep.subr.mxu0 0.0
    %109 = vmatpush1.msra.mxu0 0.0
    %110 = vmatprep.subr.mxu0 0.0
    %111 = vmatpush1.msra.mxu0 0.0
    %112 = vmatprep.subr.mxu0 0.0
    %113 = vmatpush1.msra.mxu0 0.0
    %114 = vmatprep.subr.mxu0 0.0
    %115 = vmatpush1.msra.mxu0 0.0
    %116 = vmatprep.subr.mxu0 0.0
    %117 = vmatpush1.msra.mxu0 0.0
    %118 = vmatprep.mubr.f32.mxu0 0.0
    %119 = vmatmul.mubr.f32.gmra.mrb[0].mxu0 %v52
    %v120 = vpop.f32.mrb[0].mxu0
    %v121 = vadd.f32 0.0, %v120
    %v122 = vpop.f32.mrb[0].mxu0
    %123 = vdwg.mxu0
    %v124 = vadd.f32 %v46, %v121
    %v125 = vld [vmem:[%s2] sm:$0x1]
    %v127 = vlaneseq
    %v128 = vshrl.u32 %v127, 7
    %v129 = vsub.s32 0, %v128
    %v130 = vrot.slane %v125, %v129
    %v132 = vadd.f32 %v124, %v130
    %v133 = vmax.f32 %v132, 1e-30
    %v134 = vrsqrt.pop %v133
    %135 = vst [vmem:[#allocation7] sm:$0xff] %v134
    // Predicated region
    $region22: #{tpu_custom_call.1} parent=1 // pred_check
      _
    $region23: #{tpu_custom_call.1} parent=1 // pred_check_branch
      %137 = sbr.rel (0) target = $region25
    $region24: #{tpu_custom_call.1} parent=1 // pred_region
      %s139 = ssub.s32 128, 128
      %140 = vsyncadd [#allocation4], %s139
      %s142 = sshll.u32 [#allocation7], 4
      %s143 = int_to_ptr.vmem [resolvable:$true] %s142
      %145 = dma.vmem_to_hbm [thread:$0]  %s143, 128, %s3, [#allocation4]
    $region25: #{tpu_custom_call.1} parent=1 // pred_fallthru
      _
    // Predicated region
    $region26: #{tpu_custom_call.1} parent=1 // pred_check
      _
    $region27: #{tpu_custom_call.1} parent=1 // pred_check_branch
      %147 = sbr.rel (0) target = $region29
    $region28: #{tpu_custom_call.1} parent=1 // pred_region
      %148 = dma.done [#allocation4], 128
    $region29: #{tpu_custom_call.1} parent=1 // pred_fallthru
      _
    %149 = vsyncpa [#allocation3], 1
    %150 = vsyncpa [#allocation6], 1
    %151 = vsyncpa [#allocation4], 1

</llo_original>
